<compile_context>
chip_gen: v7x
topology: tpu7x:2x2x1
jax: 0.10.0
libtpu: 0.0.40
codegen_flags: <defaults>
</compile_context>

<pallas_src>
import jax
import jax.numpy as jnp
from jax.experimental import pallas as pl
from jax.experimental.pallas import tpu as pltpu


NEG_SLOPE = 0.01  # nn.LeakyReLU default negative_slope


def _leaky_relu(x):
    return jnp.where(x > 0, x, NEG_SLOPE * x)


# ---------------------------------------------------------------------------
# Kernel: fused Encoder + Decoder MLP on one (tb, input_dim) row tile.
# ---------------------------------------------------------------------------
def _teacher_kernel(x_ref,
                    w1_ref, b1_ref, w2_ref, b2_ref,
                    w3_ref, b3_ref, w4_ref, b4_ref,
                    z_ref, y_ref):
    x = x_ref[...].astype(jnp.float32)

    # Encoder Ev
    h1 = jnp.dot(x, w1_ref[...], preferred_element_type=jnp.float32) + b1_ref[...]
    h1 = _leaky_relu(h1)
    z = jnp.dot(h1, w2_ref[...], preferred_element_type=jnp.float32) + b2_ref[...]
    z = _leaky_relu(z)

    # Decoder Dv
    h2 = jnp.dot(z, w3_ref[...], preferred_element_type=jnp.float32) + b3_ref[...]
    h2 = _leaky_relu(h2)
    logits = jnp.dot(h2, w4_ref[...], preferred_element_type=jnp.float32) + b4_ref[...]
    y = 1.0 / (1.0 + jnp.exp(-logits))  # sigmoid (exp lowers to the EUP slot)

    z_ref[...] = z.astype(z_ref.dtype)
    y_ref[...] = y.astype(y_ref.dtype)


# ---------------------------------------------------------------------------
# Parameter construction (weights stored as (in, out) so the kernel computes
# x @ W, equivalent to torch's x @ W.T with W stored (out, in)).
# ---------------------------------------------------------------------------
def init_teacher_params(key, input_dim, output_dim, embedding_dim):
    layer_dims = [
        (input_dim, 14),          # Ev.L1[0]
        (14, embedding_dim),      # Ev.L1[2]
        (embedding_dim, 14),      # Dv.L2[0]
        (14, output_dim),         # Dv.L2[2]
    ]
    params = {}
    for idx, (fan_in, fan_out) in enumerate(layer_dims, start=1):
        key, kw, kb = jax.random.split(key, 3)
        bound = 1.0 / (fan_in ** 0.5)  # torch Linear default init bound
        params[f"w{idx}"] = jax.random.uniform(
            kw, (fan_in, fan_out), jnp.float32, -bound, bound)
        params[f"b{idx}"] = jax.random.uniform(
            kb, (1, fan_out), jnp.float32, -bound, bound)
    return params


# ---------------------------------------------------------------------------
# Wrapper (the "module forward")
# ---------------------------------------------------------------------------
def _round_up(n, m):
    return ((n + m - 1) // m) * m


def teacher_forward(f, params, *, block_rows=1024):
    """f: (N, input_dim). Returns (z, y) = ((N, embedding_dim), (N, output_dim))."""
    N, d_in = f.shape
    w1, b1 = params["w1"], params["b1"]
    w2, b2 = params["w2"], params["b2"]
    w3, b3 = params["w3"], params["b3"]
    w4, b4 = params["w4"], params["b4"]
    d_emb = w2.shape[1]
    d_out = w4.shape[1]

    # Row tile: multiple of 8 (sublane), capped at block_rows. Pad the batch so
    # the grid divides evenly; padded rows are sliced off afterwards.
    tb = block_rows if N >= block_rows else _round_up(N, 8)
    n_pad = _round_up(N, tb)
    f_p = jnp.pad(f, ((0, n_pad - N), (0, 0))) if n_pad != N else f
    grid = (n_pad // tb,)

    row_map = lambda i: (i, 0)     # tiled over the batch axis
    full_map = lambda i: (0, 0)    # weights/biases: same (whole) block every step

    z, y = pl.pallas_call(
        _teacher_kernel,
        out_shape=(
            jax.ShapeDtypeStruct((n_pad, d_emb), f.dtype),
            jax.ShapeDtypeStruct((n_pad, d_out), f.dtype),
        ),
        grid=grid,
        in_specs=[
            pl.BlockSpec((tb, d_in), row_map),
            pl.BlockSpec(w1.shape, full_map), pl.BlockSpec(b1.shape, full_map),
            pl.BlockSpec(w2.shape, full_map), pl.BlockSpec(b2.shape, full_map),
            pl.BlockSpec(w3.shape, full_map), pl.BlockSpec(b3.shape, full_map),
            pl.BlockSpec(w4.shape, full_map), pl.BlockSpec(b4.shape, full_map),
        ],
        out_specs=(
            pl.BlockSpec((tb, d_emb), row_map),
            pl.BlockSpec((tb, d_out), row_map),
        ),
        compiler_params=pltpu.CompilerParams(
            dimension_semantics=("parallel",),      # shard rows across TCs (v7x)
            vmem_limit_bytes=32 * 1024 * 1024,      # fits v7x's smaller VMEM
        ),
    )(f_p, w1, b1, w2, b2, w3, b3, w4, b4)

    if n_pad != N:
        z = z[:N]
        y = y[:N]
    return z, y


# Pure-JAX reference for correctness checking.
def teacher_reference(f, params):
    h1 = _leaky_relu(f @ params["w1"] + params["b1"])
    z = _leaky_relu(h1 @ params["w2"] + params["b2"])
    h2 = _leaky_relu(z @ params["w3"] + params["b3"])
    y = jax.nn.sigmoid(h2 @ params["w4"] + params["b4"])
    return z, y


# ---------------------------------------------------------------------------
# Main
# ---------------------------------------------------------------------------
if __name__ == "__main__":
    INPUT_DIM = 28
    OUTPUT_DIM = 28
    EMBEDDING_DIM = 20
    BATCH = 16

    key = jax.random.PRNGKey(0)
    key, kx, kp = jax.random.split(key, 3)
    f = jax.random.normal(kx, (BATCH, INPUT_DIM), dtype=jnp.float32)
    params = init_teacher_params(kp, INPUT_DIM, OUTPUT_DIM, EMBEDDING_DIM)

    z, y = teacher_forward(f, params)
    z = jax.block_until_ready(z)
    y = jax.block_until_ready(y)

    z_ref, y_ref = teacher_reference(f, params)
    assert z.shape == (BATCH, EMBEDDING_DIM)
    assert y.shape == (BATCH, OUTPUT_DIM)
    assert jnp.allclose(z, z_ref, atol=1e-5, rtol=1e-5)
    assert jnp.allclose(y, y_ref, atol=1e-5, rtol=1e-5)

    # TODO(synk): feature widths (28/14/20) are below the 128-lane vreg width so the
    # z/y stores are masked; making them lane-dense would require padding features to
    # 128, which increases HBM traffic on this memory-bound kernel and is a net loss.

    print("KERNEL_OK")
</pallas_src>

<mosaic_0001>
module attributes {stable_mosaic.version = 11 : i64} {
  func.func @_teacher_kernel(%arg0: i32, %arg1: memref<16x28xf32, #tpu.memory_space<vmem>>, %arg2: memref<28x14xf32, #tpu.memory_space<vmem>>, %arg3: memref<1x14xf32, #tpu.memory_space<vmem>>, %arg4: memref<14x20xf32, #tpu.memory_space<vmem>>, %arg5: memref<1x20xf32, #tpu.memory_space<vmem>>, %arg6: memref<20x14xf32, #tpu.memory_space<vmem>>, %arg7: memref<1x14xf32, #tpu.memory_space<vmem>>, %arg8: memref<14x28xf32, #tpu.memory_space<vmem>>, %arg9: memref<1x28xf32, #tpu.memory_space<vmem>>, %arg10: memref<16x20xf32, #tpu.memory_space<vmem>>, %arg11: memref<16x28xf32, #tpu.memory_space<vmem>>) attributes {dimension_semantics = [#tpu.dimension_semantics<parallel>], iteration_bounds = array<i64: 1>, scalar_prefetch = 0 : i64, scratch_operands = 0 : i64, tpu.core_type = #tpu.core_type<tc>, window_params = [{transform_indices = @transform_0, window_bounds = array<i64: 16, 28>}, {pipeline_mode = #tpu.pipeline_mode<synchronous>, transform_indices = @transform_1, window_bounds = array<i64: 28, 14>}, {pipeline_mode = #tpu.pipeline_mode<synchronous>, transform_indices = @transform_2, window_bounds = array<i64: 1, 14>}, {pipeline_mode = #tpu.pipeline_mode<synchronous>, transform_indices = @transform_3, window_bounds = array<i64: 14, 20>}, {pipeline_mode = #tpu.pipeline_mode<synchronous>, transform_indices = @transform_4, window_bounds = array<i64: 1, 20>}, {pipeline_mode = #tpu.pipeline_mode<synchronous>, transform_indices = @transform_5, window_bounds = array<i64: 20, 14>}, {pipeline_mode = #tpu.pipeline_mode<synchronous>, transform_indices = @transform_6, window_bounds = array<i64: 1, 14>}, {pipeline_mode = #tpu.pipeline_mode<synchronous>, transform_indices = @transform_7, window_bounds = array<i64: 14, 28>}, {pipeline_mode = #tpu.pipeline_mode<synchronous>, transform_indices = @transform_8, window_bounds = array<i64: 1, 28>}, {transform_indices = @transform_9, window_bounds = array<i64: 16, 20>}, {transform_indices = @transform_10, window_bounds = array<i64: 16, 28>}]} {
    %c0 = arith.constant 0 : index
    %c0_0 = arith.constant 0 : index
    %0 = vector.load %arg1[%c0, %c0_0] : memref<16x28xf32, #tpu.memory_space<vmem>>, vector<16x28xf32>
    %c0_1 = arith.constant 0 : index
    %c0_2 = arith.constant 0 : index
    %1 = vector.load %arg2[%c0_1, %c0_2] : memref<28x14xf32, #tpu.memory_space<vmem>>, vector<28x14xf32>
    %cst = arith.constant dense<0.000000e+00> : vector<16x14xf32>
    %2 = tpu.matmul %0, %1, %cst {dimension_numbers = #tpu.dot_dimension_numbers<[1], [0], [0], [1], [0, 0, 1, 1], [], []>} : vector<16x28xf32>, vector<28x14xf32>, vector<16x14xf32> -> vector<16x14xf32>
    %c0_3 = arith.constant 0 : index
    %c0_4 = arith.constant 0 : index
    %3 = vector.load %arg3[%c0_3, %c0_4] : memref<1x14xf32, #tpu.memory_space<vmem>>, vector<1x14xf32>
    %4 = vector.broadcast %3 : vector<1x14xf32> to vector<16x14xf32>
    %5 = arith.addf %2, %4 : vector<16x14xf32>
    %cst_5 = arith.constant 0.000000e+00 : f32
    %6 = vector.broadcast %cst_5 : f32 to vector<16x14xf32>
    %7 = arith.cmpf ogt, %5, %6 : vector<16x14xf32>
    %cst_6 = arith.constant 0.00999999977 : f32
    %8 = vector.broadcast %cst_6 : f32 to vector<16x14xf32>
    %9 = arith.mulf %8, %5 : vector<16x14xf32>
    %10 = arith.select %7, %5, %9 : vector<16x14xi1>, vector<16x14xf32>
    %c0_7 = arith.constant 0 : index
    %c0_8 = arith.constant 0 : index
    %11 = vector.load %arg4[%c0_7, %c0_8] : memref<14x20xf32, #tpu.memory_space<vmem>>, vector<14x20xf32>
    %cst_9 = arith.constant dense<0.000000e+00> : vector<16x20xf32>
    %12 = tpu.matmul %10, %11, %cst_9 {dimension_numbers = #tpu.dot_dimension_numbers<[1], [0], [0], [1], [0, 0, 1, 1], [], []>} : vector<16x14xf32>, vector<14x20xf32>, vector<16x20xf32> -> vector<16x20xf32>
    %c0_10 = arith.constant 0 : index
    %c0_11 = arith.constant 0 : index
    %13 = vector.load %arg5[%c0_10, %c0_11] : memref<1x20xf32, #tpu.memory_space<vmem>>, vector<1x20xf32>
    %14 = vector.broadcast %13 : vector<1x20xf32> to vector<16x20xf32>
    %15 = arith.addf %12, %14 : vector<16x20xf32>
    %cst_12 = arith.constant 0.000000e+00 : f32
    %16 = vector.broadcast %cst_12 : f32 to vector<16x20xf32>
    %17 = arith.cmpf ogt, %15, %16 : vector<16x20xf32>
    %cst_13 = arith.constant 0.00999999977 : f32
    %18 = vector.broadcast %cst_13 : f32 to vector<16x20xf32>
    %19 = arith.mulf %18, %15 : vector<16x20xf32>
    %20 = arith.select %17, %15, %19 : vector<16x20xi1>, vector<16x20xf32>
    %c0_14 = arith.constant 0 : index
    %c0_15 = arith.constant 0 : index
    %21 = vector.load %arg6[%c0_14, %c0_15] : memref<20x14xf32, #tpu.memory_space<vmem>>, vector<20x14xf32>
    %cst_16 = arith.constant dense<0.000000e+00> : vector<16x14xf32>
    %22 = tpu.matmul %20, %21, %cst_16 {dimension_numbers = #tpu.dot_dimension_numbers<[1], [0], [0], [1], [0, 0, 1, 1], [], []>} : vector<16x20xf32>, vector<20x14xf32>, vector<16x14xf32> -> vector<16x14xf32>
    %c0_17 = arith.constant 0 : index
    %c0_18 = arith.constant 0 : index
    %23 = vector.load %arg7[%c0_17, %c0_18] : memref<1x14xf32, #tpu.memory_space<vmem>>, vector<1x14xf32>
    %24 = vector.broadcast %23 : vector<1x14xf32> to vector<16x14xf32>
    %25 = arith.addf %22, %24 : vector<16x14xf32>
    %cst_19 = arith.constant 0.000000e+00 : f32
    %26 = vector.broadcast %cst_19 : f32 to vector<16x14xf32>
    %27 = arith.cmpf ogt, %25, %26 : vector<16x14xf32>
    %cst_20 = arith.constant 0.00999999977 : f32
    %28 = vector.broadcast %cst_20 : f32 to vector<16x14xf32>
    %29 = arith.mulf %28, %25 : vector<16x14xf32>
    %30 = arith.select %27, %25, %29 : vector<16x14xi1>, vector<16x14xf32>
    %c0_21 = arith.constant 0 : index
    %c0_22 = arith.constant 0 : index
    %31 = vector.load %arg8[%c0_21, %c0_22] : memref<14x28xf32, #tpu.memory_space<vmem>>, vector<14x28xf32>
    %cst_23 = arith.constant dense<0.000000e+00> : vector<16x28xf32>
    %32 = tpu.matmul %30, %31, %cst_23 {dimension_numbers = #tpu.dot_dimension_numbers<[1], [0], [0], [1], [0, 0, 1, 1], [], []>} : vector<16x14xf32>, vector<14x28xf32>, vector<16x28xf32> -> vector<16x28xf32>
    %c0_24 = arith.constant 0 : index
    %c0_25 = arith.constant 0 : index
    %33 = vector.load %arg9[%c0_24, %c0_25] : memref<1x28xf32, #tpu.memory_space<vmem>>, vector<1x28xf32>
    %34 = vector.broadcast %33 : vector<1x28xf32> to vector<16x28xf32>
    %35 = arith.addf %32, %34 : vector<16x28xf32>
    %cst_26 = arith.constant 0.000000e+00 : f32
    %36 = vector.broadcast %cst_26 : f32 to vector<16x28xf32>
    %37 = arith.subf %36, %35 : vector<16x28xf32>
    %38 = math.exp %37 : vector<16x28xf32>
    %cst_27 = arith.constant 1.000000e+00 : f32
    %39 = vector.broadcast %cst_27 : f32 to vector<16x28xf32>
    %40 = arith.addf %39, %38 : vector<16x28xf32>
    %cst_28 = arith.constant 1.000000e+00 : f32
    %41 = vector.broadcast %cst_28 : f32 to vector<16x28xf32>
    %42 = arith.divf %41, %40 : vector<16x28xf32>
    %c0_29 = arith.constant 0 : index
    %c0_30 = arith.constant 0 : index
    %43 = vector.load %arg10[%c0_29, %c0_30] : memref<16x20xf32, #tpu.memory_space<vmem>>, vector<16x20xf32>
    tpu.vector_store %arg10[%c0_29, %c0_30], %20 {strides = array<i32>} : memref<16x20xf32, #tpu.memory_space<vmem>>, vector<16x20xf32>,
    %c0_31 = arith.constant 0 : index
    %c0_32 = arith.constant 0 : index
    %44 = vector.load %arg11[%c0_31, %c0_32] : memref<16x28xf32, #tpu.memory_space<vmem>>, vector<16x28xf32>
    tpu.vector_store %arg11[%c0_31, %c0_32], %42 {strides = array<i32>} : memref<16x28xf32, #tpu.memory_space<vmem>>, vector<16x28xf32>,
    return
  }
  func.func @transform_0(%arg0: i32) -> (i32, i32) {
    %c0_i32 = arith.constant 0 : i32
    %c0_i32_0 = arith.constant 0 : i32
    return %arg0, %c0_i32 : i32, i32
  }
  func.func @transform_1(%arg0: i32) -> (i32, i32) {
    %c0_i32 = arith.constant 0 : i32
    %c0_i32_0 = arith.constant 0 : i32
    %c0_i32_1 = arith.constant 0 : i32
    return %c0_i32, %c0_i32_0 : i32, i32
  }
  func.func @transform_2(%arg0: i32) -> (i32, i32) {
    %c0_i32 = arith.constant 0 : i32
    %c0_i32_0 = arith.constant 0 : i32
    %c0_i32_1 = arith.constant 0 : i32
    return %c0_i32, %c0_i32_0 : i32, i32
  }
  func.func @transform_3(%arg0: i32) -> (i32, i32) {
    %c0_i32 = arith.constant 0 : i32
    %c0_i32_0 = arith.constant 0 : i32
    %c0_i32_1 = arith.constant 0 : i32
    return %c0_i32, %c0_i32_0 : i32, i32
  }
  func.func @transform_4(%arg0: i32) -> (i32, i32) {
    %c0_i32 = arith.constant 0 : i32
    %c0_i32_0 = arith.constant 0 : i32
    %c0_i32_1 = arith.constant 0 : i32
    return %c0_i32, %c0_i32_0 : i32, i32
  }
  func.func @transform_5(%arg0: i32) -> (i32, i32) {
    %c0_i32 = arith.constant 0 : i32
    %c0_i32_0 = arith.constant 0 : i32
    %c0_i32_1 = arith.constant 0 : i32
    return %c0_i32, %c0_i32_0 : i32, i32
  }
  func.func @transform_6(%arg0: i32) -> (i32, i32) {
    %c0_i32 = arith.constant 0 : i32
    %c0_i32_0 = arith.constant 0 : i32
    %c0_i32_1 = arith.constant 0 : i32
    return %c0_i32, %c0_i32_0 : i32, i32
  }
  func.func @transform_7(%arg0: i32) -> (i32, i32) {
    %c0_i32 = arith.constant 0 : i32
    %c0_i32_0 = arith.constant 0 : i32
    %c0_i32_1 = arith.constant 0 : i32
    return %c0_i32, %c0_i32_0 : i32, i32
  }
  func.func @transform_8(%arg0: i32) -> (i32, i32) {
    %c0_i32 = arith.constant 0 : i32
    %c0_i32_0 = arith.constant 0 : i32
    %c0_i32_1 = arith.constant 0 : i32
    return %c0_i32, %c0_i32_0 : i32, i32
  }
  func.func @transform_9(%arg0: i32) -> (i32, i32) {
    %c0_i32 = arith.constant 0 : i32
    %c0_i32_0 = arith.constant 0 : i32
    return %arg0, %c0_i32 : i32, i32
  }
  func.func @transform_10(%arg0: i32) -> (i32, i32) {
    %c0_i32 = arith.constant 0 : i32
    %c0_i32_0 = arith.constant 0 : i32
    return %arg0, %c0_i32 : i32, i32
  }
}

</mosaic_0001>

<llo_original>
// kernel: tpu_custom_call.1
$region0: #{tpu_custom_call.1}
  #allocation0 [shape = 'u32[]', space=smem, size = 0x4, offset = 0x4, fixed_abs, tag = 'smem constant byte address 0x4 - core index']
  #allocation1 [shape = 'u32[144,128]{1,0:T(1,128)}', space=vmem, size = 0x12000, scoped, tag = 'internal scratch']
  %s0 = inlined_call_operand.vmem [shape: f32[16,28], index: 0, kind: input, shape index: {}]
  %s1 = inlined_call_operand.vmem [shape: f32[28,14], index: 1, kind: input, shape index: {}]
  %s2 = inlined_call_operand.vmem [shape: f32[1,14], index: 2, kind: input, shape index: {}]
  %s3 = inlined_call_operand.vmem [shape: f32[14,20], index: 3, kind: input, shape index: {}]
  %s4 = inlined_call_operand.vmem [shape: f32[1,20], index: 4, kind: input, shape index: {}]
  %s5 = inlined_call_operand.vmem [shape: f32[20,14], index: 5, kind: input, shape index: {}]
  %s6 = inlined_call_operand.vmem [shape: f32[1,14], index: 6, kind: input, shape index: {}]
  %s7 = inlined_call_operand.vmem [shape: f32[14,28], index: 7, kind: input, shape index: {}]
  %s8 = inlined_call_operand.vmem [shape: f32[1,28], index: 8, kind: input, shape index: {}]
  %s9 = inlined_call_operand.hbm [shape: f32[16,20], index: 9, kind: output, shape index: {0}]
  %s10 = inlined_call_operand.hbm [shape: f32[16,28], index: 10, kind: output, shape index: {1}]
  %11 = xla_tuple %s9, %s10
  %s12 = sld [smem:[#allocation0]]
  $region54: #{tpu_custom_call.1} parent=0
    _
  %s14 = ssub.s32 1, %s12
  %s15 = scalar_select 0, %s14, %s12
  $region1: #{tpu_custom_call.1} parent=0
    #allocation2 [shape = 'u8[8192]{0}', space=vmem, size = 0x2000, scoped, tag = 'output window, operand 0, single buffered']
    #allocation3 [shape = 's32[1]{0}', space=sflag, size = 0x4, scoped, tag = 'scoped memory for tpu_custom_call.1']
    #allocation4 [shape = 'u8[8192]{0}', space=vmem, size = 0x2000, scoped, tag = 'output window, operand 1, single buffered']
    #allocation5 [shape = 's32[1]{0}', space=sflag, size = 0x4, scoped, tag = 'scoped memory for tpu_custom_call.1']
    %16 = vsyncpa [#allocation3], 0
    %17 = vsyncpa [#allocation5], 0
    // Predicated region
    $region2: #{tpu_custom_call.1} parent=1 // pred_check
      _
    $region3: #{tpu_custom_call.1} parent=1 // pred_check_branch
      %19 = sbr.rel (0) target = $region5
    $region4: #{tpu_custom_call.1} parent=1 // pred_region
      _
    $region5: #{tpu_custom_call.1} parent=1 // pred_fallthru
      _
    // Predicated region
    $region6: #{tpu_custom_call.1} parent=1 // pred_check
      _
    $region7: #{tpu_custom_call.1} parent=1 // pred_check_branch
      %21 = sbr.rel (0) target = $region9
    $region8: #{tpu_custom_call.1} parent=1 // pred_region
      _
    $region9: #{tpu_custom_call.1} parent=1 // pred_fallthru
      _
    // Predicated region
    $region10: #{tpu_custom_call.1} parent=1 // pred_check
      _
    $region11: #{tpu_custom_call.1} parent=1 // pred_check_branch
      %23 = sbr.rel (0) target = $region13
    $region12: #{tpu_custom_call.1} parent=1 // pred_region
      _
    $region13: #{tpu_custom_call.1} parent=1 // pred_fallthru
      _
    // Predicated region
    $region14: #{tpu_custom_call.1} parent=1 // pred_check
      _
    $region15: #{tpu_custom_call.1} parent=1 // pred_check_branch
      %25 = sbr.rel (0) target = $region17
    $region16: #{tpu_custom_call.1} parent=1 // pred_region
      _
    $region17: #{tpu_custom_call.1} parent=1 // pred_fallthru
      _
    // Predicated region
    $region18: #{tpu_custom_call.1} parent=1 // pred_check
      _
    $region19: #{tpu_custom_call.1} parent=1 // pred_check_branch
      %27 = sbr.rel (0) target = $region21
    $region20: #{tpu_custom_call.1} parent=1 // pred_region
      _
    $region21: #{tpu_custom_call.1} parent=1 // pred_fallthru
      _
    // Predicated region
    $region22: #{tpu_custom_call.1} parent=1 // pred_check
      _
    $region23: #{tpu_custom_call.1} parent=1 // pred_check_branch
      %29 = sbr.rel (0) target = $region25
    $region24: #{tpu_custom_call.1} parent=1 // pred_region
      _
    $region25: #{tpu_custom_call.1} parent=1 // pred_fallthru
      _
    // Predicated region
    $region26: #{tpu_custom_call.1} parent=1 // pred_check
      _
    $region27: #{tpu_custom_call.1} parent=1 // pred_check_branch
      %31 = sbr.rel (0) target = $region29
    $region28: #{tpu_custom_call.1} parent=1 // pred_region
      _
    $region29: #{tpu_custom_call.1} parent=1 // pred_fallthru
      _
    // Predicated region
    $region30: #{tpu_custom_call.1} parent=1 // pred_check
      _
    $region31: #{tpu_custom_call.1} parent=1 // pred_check_branch
      %33 = sbr.rel (0) target = $region33
    $region32: #{tpu_custom_call.1} parent=1 // pred_region
      _
    $region33: #{tpu_custom_call.1} parent=1 // pred_fallthru
      _
    // Predicated region
    $region34: #{tpu_custom_call.1} parent=1 // pred_check
      _
    $region35: #{tpu_custom_call.1} parent=1 // pred_check_branch
      %35 = sbr.rel (0) target = $region37
    $region36: #{tpu_custom_call.1} parent=1 // pred_region
      _
    $region37: #{tpu_custom_call.1} parent=1 // pred_fallthru
      _
    %v36 = vld [vmem:[%s0] sm:$0xff]
    %v37 = vld [vmem:[%s0 + $0x8] sm:$0xff]
    %v38 = vld [vmem:[%s1] sm:$0xff]
    %v39 = vld [vmem:[%s1 + $0x8] sm:$0xff]
    %v40 = vld [vmem:[%s1 + $0x10] sm:$0xff]
    %v41 = vld [vmem:[%s1 + $0x18] sm:$0xf]
    %v42 = vld [vmem:[%s2] sm:$0x1]
    %v44 = vlaneseq
    %v45 = vshrl.u32 %v44, 7
    %v46 = vsub.s32 0, %v45
    %v47 = vrot.slane %v42, %v46
    %vm49 = vcmask 228352
    %v51 = vsel %vm49, %v36, 0
    %v54 = vsel %vm49, %v37, 0
    %vm56 = vcmask 1043456
    %v58 = vsel %vm56, %v41, 0
    %60 = vmatprep.subr.mxu0 0.0
    %61 = vmatpush1.msra.mxu0 %v38
    %62 = vmatprep.subr.mxu0 0.0
    %63 = vmatpush1.msra.mxu0 %v39
    %64 = vmatprep.subr.mxu0 0.0
    %65 = vmatpush1.msra.mxu0 %v40
    %66 = vmatprep.subr.mxu0 0.0
    %67 = vmatpush1.msra.mxu0 %v58
    %68 = vmatprep.subr.mxu0 0.0
    %69 = vmatpush1.msra.mxu0 0.0
    %70 = vmatprep.subr.mxu0 0.0
    %71 = vmatpush1.msra.mxu0 0.0
    %72 = vmatprep.subr.mxu0 0.0
    %73 = vmatpush1.msra.mxu0 0.0
    %74 = vmatprep.subr.mxu0 0.0
    %75 = vmatpush1.msra.mxu0 0.0
    %76 = vmatprep.subr.mxu0 0.0
    %77 = vmatpush1.msra.mxu0 0.0
    %78 = vmatprep.subr.mxu0 0.0
    %79 = vmatpush1.msra.mxu0 0.0
    %80 = vmatprep.subr.mxu0 0.0
    %81 = vmatpush1.msra.mxu0 0.0
    %82 = vmatprep.subr.mxu0 0.0
    %83 = vmatpush1.msra.mxu0 0.0
    %84 = vmatprep.subr.mxu0 0.0
    %85 = vmatpush1.msra.mxu0 0.0
    %86 = vmatprep.subr.mxu0 0.0
    %87 = vmatpush1.msra.mxu0 0.0
    %88 = vmatprep.subr.mxu0 0.0
    %89 = vmatpush1.msra.mxu0 0.0
    %90 = vmatprep.subr.mxu0 0.0
    %91 = vmatpush1.msra.mxu0 0.0
    %92 = vmatprep.subr.mxu0 0.0
    %93 = vmatpush1.msra.mxu0 0.0
    %94 = vmatprep.subr.mxu0 0.0
    %95 = vmatpush1.msra.mxu0 0.0
    %96 = vmatprep.subr.mxu0 0.0
    %97 = vmatpush1.msra.mxu0 0.0
    %98 = vmatprep.subr.mxu0 0.0
    %99 = vmatpush1.msra.mxu0 0.0
    %100 = vmatprep.subr.mxu0 0.0
    %101 = vmatpush1.msra.mxu0 0.0
    %102 = vmatprep.subr.mxu0 0.0
    %103 = vmatpush1.msra.mxu0 0.0
    %104 = vmatprep.subr.mxu0 0.0
    %105 = vmatpush1.msra.mxu0 0.0
    %106 = vmatprep.subr.mxu0 0.0
    %107 = vmatpush1.msra.mxu0 0.0
    %108 = vmatprep.subr.mxu0 0.0
    %109 = vmatpush1.msra.mxu0 0.0
    %110 = vmatprep.subr.mxu0 0.0
    %111 = vmatpush1.msra.mxu0 0.0
    %112 = vmatprep.subr.mxu0 0.0
    %113 = vmatpush1.msra.mxu0 0.0
    %114 = vmatprep.subr.mxu0 0.0
    %115 = vmatpush1.msra.mxu0 0.0
    %116 = vmatprep.subr.mxu0 0.0
    %117 = vmatpush1.msra.mxu0 0.0
    %118 = vmatprep.subr.mxu0 0.0
    %119 = vmatpush1.msra.mxu0 0.0
    %120 = vmatprep.subr.mxu0 0.0
    %121 = vmatpush1.msra.mxu0 0.0
    %122 = vmatprep.subr.mxu0 0.0
    %123 = vmatpush1.msra.mxu0 0.0
    %124 = vmatprep.mubr.f32.mxu0 0.0
    %125 = vmatmul.mubr.f32.gmra.mrb[0].mxu0 %v51
    %v126 = vpop.f32.mrb[0].mxu0
    %v127 = vadd.f32 %v47, %v126
    %v128 = vpop.f32.mrb[0].mxu0
    %129 = vmatprep.mubr.f32.mxu0 0.0
    %130 = vmatmul.mubr.f32.gmra.mrb[0].mxu0 %v54
    %v131 = vpop.f32.mrb[0].mxu0
    %v132 = vadd.f32 %v47, %v131
    %v133 = vpop.f32.mrb[0].mxu0
    %134 = vdwg.mxu0
    %vm135 = vcmp.gt.f32.partialorder %v127, 0.0
    %vm136 = vcmp.gt.f32.partialorder %v132, 0.0
    %v137 = vmul.f32 %v127, 0.01
    %v138 = vmul.f32 %v132, 0.01
    %v139 = vsel %vm135, %v127, %v137
    %v140 = vsel %vm136, %v132, %v138
    %v141 = vld [vmem:[%s3] sm:$0xff]
    %v142 = vld [vmem:[%s3 + $0x8] sm:$0x3f]
    %v143 = vld [vmem:[%s4] sm:$0x1]
    %v145 = vlaneseq
    %v146 = vshrl.u32 %v145, 7
    %v147 = vsub.s32 0, %v146
    %v148 = vrot.slane %v143, %v147
    %vm150 = vcmask 113664
    %v152 = vsel %vm150, %v139, 0
    %v155 = vsel %vm150, %v140, 0
    %vm157 = vcmask 1045504
    %v159 = vsel %vm157, %v142, 0
    %161 = vmatprep.subr.mxu0 0.0
    %162 = vmatpush1.msra.mxu0 %v141
    %163 = vmatprep.subr.mxu0 0.0
    %164 = vmatpush1.msra.mxu0 %v159
    %165 = vmatprep.subr.mxu0 0.0
    %166 = vmatpush1.msra.mxu0 0.0
    %167 = vmatprep.subr.mxu0 0.0
    %168 = vmatpush1.msra.mxu0 0.0
    %169 = vmatprep.subr.mxu0 0.0
    %170 = vmatpush1.msra.mxu0 0.0
    %171 = vmatprep.subr.mxu0 0.0
    %172 = vmatpush1.msra.mxu0 0.0
    %173 = vmatprep.subr.mxu0 0.0
    %174 = vmatpush1.msra.mxu0 0.0
    %175 = vmatprep.subr.mxu0 0.0
    %176 = vmatpush1.msra.mxu0 0.0
    %177 = vmatprep.subr.mxu0 0.0
    %178 = vmatpush1.msra.mxu0 0.0
    %179 = vmatprep.subr.mxu0 0.0
    %180 = vmatpush1.msra.mxu0 0.0
    %181 = vmatprep.subr.mxu0 0.0
    %182 = vmatpush1.msra.mxu0 0.0
    %183 = vmatprep.subr.mxu0 0.0
    %184 = vmatpush1.msra.mxu0 0.0
    %185 = vmatprep.subr.mxu0 0.0
    %186 = vmatpush1.msra.mxu0 0.0
    %187 = vmatprep.subr.mxu0 0.0
    %188 = vmatpush1.msra.mxu0 0.0
    %189 = vmatprep.subr.mxu0 0.0
    %190 = vmatpush1.msra.mxu0 0.0
    %191 = vmatprep.subr.mxu0 0.0
    %192 = vmatpush1.msra.mxu0 0.0
    %193 = vmatprep.subr.mxu0 0.0
    %194 = vmatpush1.msra.mxu0 0.0
    %195 = vmatprep.subr.mxu0 0.0
    %196 = vmatpush1.msra.mxu0 0.0
    %197 = vmatprep.subr.mxu0 0.0
    %198 = vmatpush1.msra.mxu0 0.0
    %199 = vmatprep.subr.mxu0 0.0
    %200 = vmatpush1.msra.mxu0 0.0
    %201 = vmatprep.subr.mxu0 0.0
    %202 = vmatpush1.msra.mxu0 0.0
    %203 = vmatprep.subr.mxu0 0.0
    %204 = vmatpush1.msra.mxu0 0.0
    %205 = vmatprep.subr.mxu0 0.0
    %206 = vmatpush1.msra.mxu0 0.0
    %207 = vmatprep.subr.mxu0 0.0
    %208 = vmatpush1.msra.mxu0 0.0
    %209 = vmatprep.subr.mxu0 0.0
    %210 = vmatpush1.msra.mxu0 0.0
    %211 = vmatprep.subr.mxu0 0.0
    %212 = vmatpush1.msra.mxu0 0.0
    %213 = vmatprep.subr.mxu0 0.0
    %214 = vmatpush1.msra.mxu0 0.0
    %215 = vmatprep.subr.mxu0 0.0
    %216 = vmatpush1.msra.mxu0 0.0
    %217 = vmatprep.subr.mxu0 0.0
    %218 = vmatpush1.msra.mxu0 0.0
    %219 = vmatprep.subr.mxu0 0.0
    %220 = vmatpush1.msra.mxu0 0.0
    %221 = vmatprep.subr.mxu0 0.0
    %222 = vmatpush1.msra.mxu0 0.0
    %223 = vmatprep.subr.mxu0 0.0
    %224 = vmatpush1.msra.mxu0 0.0
    %225 = vmatprep.mubr.f32.mxu0 0.0
    %226 = vmatmul.mubr.f32.gmra.mrb[0].mxu0 %v152
    %v227 = vpop.f32.mrb[0].mxu0
    %v228 = vadd.f32 %v148, %v227
    %v229 = vpop.f32.mrb[0].mxu0
    %230 = vmatprep.mubr.f32.mxu0 0.0
    %231 = vmatmul.mubr.f32.gmra.mrb[0].mxu0 %v155
    %v232 = vpop.f32.mrb[0].mxu0
    %v233 = vadd.f32 %v148, %v232
    %v234 = vpop.f32.mrb[0].mxu0
    %235 = vdwg.mxu0
    %vm236 = vcmp.gt.f32.partialorder %v228, 0.0
    %vm237 = vcmp.gt.f32.partialorder %v233, 0.0
    %v238 = vmul.f32 %v228, 0.01
    %v239 = vmul.f32 %v233, 0.01
    %v240 = vsel %vm236, %v228, %v238
    %v241 = vsel %vm237, %v233, %v239
    %v242 = vld [vmem:[%s5] sm:$0xff]
    %v243 = vld [vmem:[%s5 + $0x8] sm:$0xff]
    %v244 = vld [vmem:[%s5 + $0x10] sm:$0xf]
    %v245 = vld [vmem:[%s6] sm:$0x1]
    %v247 = vlaneseq
    %v248 = vshrl.u32 %v247, 7
    %v249 = vsub.s32 0, %v248
    %v250 = vrot.slane %v245, %v249
    %vm252 = vcmask 162816
    %v254 = vsel %vm252, %v240, 0
    %v257 = vsel %vm252, %v241, 0
    %v260 = vsel %vm56, %v244, 0
    %262 = vmatprep.subr.mxu0 0.0
    %263 = vmatpush1.msra.mxu0 %v242
    %264 = vmatprep.subr.mxu0 0.0
    %265 = vmatpush1.msra.mxu0 %v243
    %266 = vmatprep.subr.mxu0 0.0
    %267 = vmatpush1.msra.mxu0 %v260
    %268 = vmatprep.subr.mxu0 0.0
    %269 = vmatpush1.msra.mxu0 0.0
    %270 = vmatprep.subr.mxu0 0.0
    %271 = vmatpush1.msra.mxu0 0.0
    %272 = vmatprep.subr.mxu0 0.0
    %273 = vmatpush1.msra.mxu0 0.0
    %274 = vmatprep.subr.mxu0 0.0
    %275 = vmatpush1.msra.mxu0 0.0
    %276 = vmatprep.subr.mxu0 0.0
    %277 = vmatpush1.msra.mxu0 0.0
    %278 = vmatprep.subr.mxu0 0.0
    %279 = vmatpush1.msra.mxu0 0.0
    %280 = vmatprep.subr.mxu0 0.0
    %281 = vmatpush1.msra.mxu0 0.0
    %282 = vmatprep.subr.mxu0 0.0
    %283 = vmatpush1.msra.mxu0 0.0
    %284 = vmatprep.subr.mxu0 0.0
    %285 = vmatpush1.msra.mxu0 0.0
    %286 = vmatprep.subr.mxu0 0.0
    %287 = vmatpush1.msra.mxu0 0.0
    %288 = vmatprep.subr.mxu0 0.0
    %289 = vmatpush1.msra.mxu0 0.0
    %290 = vmatprep.subr.mxu0 0.0
    %291 = vmatpush1.msra.mxu0 0.0
    %292 = vmatprep.subr.mxu0 0.0
    %293 = vmatpush1.msra.mxu0 0.0
    %294 = vmatprep.subr.mxu0 0.0
    %295 = vmatpush1.msra.mxu0 0.0
    %296 = vmatprep.subr.mxu0 0.0
    %297 = vmatpush1.msra.mxu0 0.0
    %298 = vmatprep.subr.mxu0 0.0
    %299 = vmatpush1.msra.mxu0 0.0
    %300 = vmatprep.subr.mxu0 0.0
    %301 = vmatpush1.msra.mxu0 0.0
    %302 = vmatprep.subr.mxu0 0.0
    %303 = vmatpush1.msra.mxu0 0.0
    %304 = vmatprep.subr.mxu0 0.0
    %305 = vmatpush1.msra.mxu0 0.0
    %306 = vmatprep.subr.mxu0 0.0
    %307 = vmatpush1.msra.mxu0 0.0
    %308 = vmatprep.subr.mxu0 0.0
    %309 = vmatpush1.msra.mxu0 0.0
    %310 = vmatprep.subr.mxu0 0.0
    %311 = vmatpush1.msra.mxu0 0.0
    %312 = vmatprep.subr.mxu0 0.0
    %313 = vmatpush1.msra.mxu0 0.0
    %314 = vmatprep.subr.mxu0 0.0
    %315 = vmatpush1.msra.mxu0 0.0
    %316 = vmatprep.subr.mxu0 0.0
    %317 = vmatpush1.msra.mxu0 0.0
    %318 = vmatprep.subr.mxu0 0.0
    %319 = vmatpush1.msra.mxu0 0.0
    %320 = vmatprep.subr.mxu0 0.0
    %321 = vmatpush1.msra.mxu0 0.0
    %322 = vmatprep.subr.mxu0 0.0
    %323 = vmatpush1.msra.mxu0 0.0
    %324 = vmatprep.subr.mxu0 0.0
    %325 = vmatpush1.msra.mxu0 0.0
    %326 = vmatprep.mubr.f32.mxu0 0.0
    %327 = vmatmul.mubr.f32.gmra.mrb[0].mxu0 %v254
    %v328 = vpop.f32.mrb[0].mxu0
    %v329 = vadd.f32 %v250, %v328
    %v330 = vpop.f32.mrb[0].mxu0
    %331 = vmatprep.mubr.f32.mxu0 0.0
    %332 = vmatmul.mubr.f32.gmra.mrb[0].mxu0 %v257
    %v333 = vpop.f32.mrb[0].mxu0
    %v334 = vadd.f32 %v250, %v333
    %v335 = vpop.f32.mrb[0].mxu0
    %336 = vdwg.mxu0
    %vm337 = vcmp.gt.f32.partialorder %v329, 0.0
    %vm338 = vcmp.gt.f32.partialorder %v334, 0.0
    %v339 = vmul.f32 %v329, 0.01
    %v340 = vmul.f32 %v334, 0.01
    %v341 = vsel %vm337, %v329, %v339
    %v342 = vsel %vm338, %v334, %v340
    %v343 = vld [vmem:[%s7] sm:$0xff]
    %v344 = vld [vmem:[%s7 + $0x8] sm:$0x3f]
    %v345 = vld [vmem:[%s8] sm:$0x1]
    %v347 = vlaneseq
    %v348 = vshrl.u32 %v347, 7
    %v349 = vsub.s32 0, %v348
    %v350 = vrot.slane %v345, %v349
    %v353 = vsel %vm150, %v341, 0
    %v356 = vsel %vm150, %v342, 0
    %v359 = vsel %vm157, %v344, 0
    %361 = vmatprep.subr.mxu0 0.0
    %362 = vmatpush1.msra.mxu0 %v343
    %363 = vmatprep.subr.mxu0 0.0
    %364 = vmatpush1.msra.mxu0 %v359
    %365 = vmatprep.subr.mxu0 0.0
    %366 = vmatpush1.msra.mxu0 0.0
    %367 = vmatprep.subr.mxu0 0.0
    %368 = vmatpush1.msra.mxu0 0.0
    %369 = vmatprep.subr.mxu0 0.0
    %370 = vmatpush1.msra.mxu0 0.0
    %371 = vmatprep.subr.mxu0 0.0
    %372 = vmatpush1.msra.mxu0 0.0
    %373 = vmatprep.subr.mxu0 0.0
    %374 = vmatpush1.msra.mxu0 0.0
    %375 = vmatprep.subr.mxu0 0.0
    %376 = vmatpush1.msra.mxu0 0.0
    %377 = vmatprep.subr.mxu0 0.0
    %378 = vmatpush1.msra.mxu0 0.0
    %379 = vmatprep.subr.mxu0 0.0
    %380 = vmatpush1.msra.mxu0 0.0
    %381 = vmatprep.subr.mxu0 0.0
    %382 = vmatpush1.msra.mxu0 0.0
    %383 = vmatprep.subr.mxu0 0.0
    %384 = vmatpush1.msra.mxu0 0.0
    %385 = vmatprep.subr.mxu0 0.0
    %386 = vmatpush1.msra.mxu0 0.0
    %387 = vmatprep.subr.mxu0 0.0
    %388 = vmatpush1.msra.mxu0 0.0
    %389 = vmatprep.subr.mxu0 0.0
    %390 = vmatpush1.msra.mxu0 0.0
    %391 = vmatprep.subr.mxu0 0.0
    %392 = vmatpush1.msra.mxu0 0.0
    %393 = vmatprep.subr.mxu0 0.0
    %394 = vmatpush1.msra.mxu0 0.0
    %395 = vmatprep.subr.mxu0 0.0
    %396 = vmatpush1.msra.mxu0 0.0
    %397 = vmatprep.subr.mxu0 0.0
    %398 = vmatpush1.msra.mxu0 0.0
    %399 = vmatprep.subr.mxu0 0.0
    %400 = vmatpush1.msra.mxu0 0.0
    %401 = vmatprep.subr.mxu0 0.0
    %402 = vmatpush1.msra.mxu0 0.0
    %403 = vmatprep.subr.mxu0 0.0
    %404 = vmatpush1.msra.mxu0 0.0
    %405 = vmatprep.subr.mxu0 0.0
    %406 = vmatpush1.msra.mxu0 0.0
    %407 = vmatprep.subr.mxu0 0.0
    %408 = vmatpush1.msra.mxu0 0.0
    %409 = vmatprep.subr.mxu0 0.0
    %410 = vmatpush1.msra.mxu0 0.0
    %411 = vmatprep.subr.mxu0 0.0
    %412 = vmatpush1.msra.mxu0 0.0
    %413 = vmatprep.subr.mxu0 0.0
    %414 = vmatpush1.msra.mxu0 0.0
    %415 = vmatprep.subr.mxu0 0.0
    %416 = vmatpush1.msra.mxu0 0.0
    %417 = vmatprep.subr.mxu0 0.0
    %418 = vmatpush1.msra.mxu0 0.0
    %419 = vmatprep.subr.mxu0 0.0
    %420 = vmatpush1.msra.mxu0 0.0
    %421 = vmatprep.subr.mxu0 0.0
    %422 = vmatpush1.msra.mxu0 0.0
    %423 = vmatprep.subr.mxu0 0.0
    %424 = vmatpush1.msra.mxu0 0.0
    %425 = vmatprep.mubr.f32.mxu0 0.0
    %426 = vmatmul.mubr.f32.gmra.mrb[0].mxu0 %v353
    %v427 = vpop.f32.mrb[0].mxu0
    %v428 = vadd.f32 %v350, %v427
    %v429 = vpop.f32.mrb[0].mxu0
    %430 = vmatprep.mubr.f32.mxu0 0.0
    %431 = vmatmul.mubr.f32.gmra.mrb[0].mxu0 %v356
    %v432 = vpop.f32.mrb[0].mxu0
    %v433 = vadd.f32 %v350, %v432
    %v434 = vpop.f32.mrb[0].mxu0
    %435 = vdwg.mxu0
    %v436 = vsub.f32 0.0, %v428
    %v437 = vsub.f32 0.0, %v433
    %v438 = vmul.f32 %v436, 1.442695
    %v439 = vpow.pop %v438
    %v440 = vmul.f32 %v437, 1.442695
    %v441 = vpow.pop %v440
    %v442 = vadd.f32 %v439, 1.0
    %v443 = vadd.f32 %v441, 1.0
    %v444 = vrcp.pop %v442
    %v445 = vmul.f32 1.0, %v444
    %v446 = vrcp.pop %v443
    %v447 = vmul.f32 1.0, %v446
    %448 = vst.msk [vmem:[#allocation2] sm:$0xff] %vm252, %v240
    %449 = vst.msk [vmem:[#allocation2 + $0x8] sm:$0xff] %vm252, %v241
    %450 = vst.msk [vmem:[#allocation4] sm:$0xff] %vm49, %v445
    %451 = vst.msk [vmem:[#allocation4 + $0x8] sm:$0xff] %vm49, %v447
    // Predicated region
    $region38: #{tpu_custom_call.1} parent=1 // pred_check
      _
    $region39: #{tpu_custom_call.1} parent=1 // pred_check_branch
      %453 = sbr.rel (0) target = $region41
    $region40: #{tpu_custom_call.1} parent=1 // pred_region
      %s455 = ssub.s32 256, 256
      %456 = vsyncadd [#allocation3], %s455
      %s457 = sshll.u32 [#allocation2], 4
      %s458 = int_to_ptr.vmem [resolvable:$true] %s457
      %463 = dma.vmem_to_hbm [thread:$0]  %s458, 256, %s9, [#allocation3], 128, 128, 8
    $region41: #{tpu_custom_call.1} parent=1 // pred_fallthru
      _
    // Predicated region
    $region42: #{tpu_custom_call.1} parent=1 // pred_check
      _
    $region43: #{tpu_custom_call.1} parent=1 // pred_check_branch
      %465 = sbr.rel (0) target = $region45
    $region44: #{tpu_custom_call.1} parent=1 // pred_region
      %s467 = ssub.s32 256, 256
      %468 = vsyncadd [#allocation5], %s467
      %s469 = sshll.u32 [#allocation4], 4
      %s470 = int_to_ptr.vmem [resolvable:$true] %s469
      %475 = dma.vmem_to_hbm [thread:$0]  %s470, 256, %s10, [#allocation5], 128, 128, 8
    $region45: #{tpu_custom_call.1} parent=1 // pred_fallthru
      _
    // Predicated region
    $region46: #{tpu_custom_call.1} parent=1 // pred_check
      _
    $region47: #{tpu_custom_call.1} parent=1 // pred_check_branch
      %477 = sbr.rel (0) target = $region49
    $region48: #{tpu_custom_call.1} parent=1 // pred_region
      %478 = dma.done [#allocation3], 256
    $region49: #{tpu_custom_call.1} parent=1 // pred_fallthru
      _
    // Predicated region
    $region50: #{tpu_custom_call.1} parent=1 // pred_check
      _
    $region51: #{tpu_custom_call.1} parent=1 // pred_check_branch
      %480 = sbr.rel (0) target = $region53
    $region52: #{tpu_custom_call.1} parent=1 // pred_region
      %481 = dma.done [#allocation5], 256
    $region53: #{tpu_custom_call.1} parent=1 // pred_fallthru
      _
    %482 = vsyncpa [#allocation3], 1
    %483 = vsyncpa [#allocation5], 1

</llo_original>
